<compile_context>
chip_gen: v7x
topology: tpu7x:2x2x1
jax: 0.10.0
libtpu: 0.0.40
codegen_flags: <defaults>
</compile_context>

<pallas_src>
import functools

import jax
import jax.numpy as jnp
from jax.experimental import pallas as pl
from jax.experimental.pallas import tpu as pltpu


def _round_up(n: int, m: int) -> int:
    return ((n + m - 1) // m) * m


def _build_layer_dims(input_size: int, hidden_layer_ann: int):
    """Mirror the Python loop in ANN.__init__ to get the hidden layer widths."""
    dims = []
    in_f = int(input_size)
    h = int(hidden_layer_ann)
    while h > 10:
        dims.append((in_f, h))
        in_f = h
        h = h // 2
    return dims, in_f  # hidden (in, out) pairs, and fc input size


def _choose_tm(batch: int, tm_max: int) -> int:
    """Pick the batch tile: large (amortize ~0.35us/step), multiple of 128,
    and such that the grid has >= 2 steps whenever the batch allows (v7x has
    two TensorCores; the extra step is negligible on single-TC v5e/v6e)."""
    tm_max = max(128, _round_up(int(tm_max), 128))
    b128 = _round_up(batch, 128)
    if b128 <= 128:
        return 128  # nothing to split
    return min(tm_max, _round_up(pl.cdiv(b128, 2), 128))


# --------------------------------------------------------------------------- #
# Kernel
# --------------------------------------------------------------------------- #
def _mlp_kernel(num_hidden, x_ref, *refs):
    # refs = [W0, b0, W1, b1, ..., fc_w_row, fc_b, out_ref]
    out_ref = refs[-1]
    params = refs[:-1]

    h_mm = x_ref[...]                         # bf16 (TM, F) matmul input
    h32 = h_mm.astype(jnp.float32) if num_hidden == 0 else None
    for l in range(num_hidden):
        W = params[2 * l][...]                # bf16 (in, out)
        b = params[2 * l + 1][...]            # f32  (1, out)
        # Linear (MXU, f32 accumulate) -> bias -> ReLU.
        # BatchNorm already folded into W/b; Dropout = identity.
        z = jnp.dot(h_mm, W, preferred_element_type=jnp.float32) + b
        h32 = jnp.maximum(z, 0.0)
        h_mm = h32.astype(jnp.bfloat16)       # next matmul input

    # Final fc (fc_in -> 1): VPU multiply + lane reduction (no padded matmul).
    w_fc = params[2 * num_hidden][...]        # f32 (1, fc_in)
    b_fc = params[2 * num_hidden + 1][...]    # f32 (1, 1)
    out_ref[...] = jnp.sum(h32 * w_fc, axis=-1, keepdims=True) + b_fc


# --------------------------------------------------------------------------- #
# Wrapper
# --------------------------------------------------------------------------- #
def ann_forward_pallas(x, folded_hidden, fc_w_row, fc_b, *, tm=2048):
    """x: (B, input_size) float.  folded_hidden: list of (W, b) with BN folded.
    fc_w_row: (1, fc_in), fc_b: (1, 1).  Returns (B, 1) f32."""
    B, F = x.shape

    TM = _choose_tm(B, tm)
    B_pad = _round_up(B, TM)

    # bf16 matmul inputs (halves the x HBM stream); assumes upstream data can
    # live in bf16.  Accumulation stays f32 inside the kernel.
    x = x.astype(jnp.bfloat16)
    if B_pad != B:
        x = jnp.pad(x, ((0, B_pad - B), (0, 0)))

    flat_params = []
    for (W, b) in folded_hidden:
        flat_params += [W.astype(jnp.bfloat16), b.astype(jnp.float32)]
    flat_params += [fc_w_row.astype(jnp.float32), fc_b.astype(jnp.float32)]

    num_hidden = len(folded_hidden)
    kernel = functools.partial(_mlp_kernel, num_hidden)

    grid = (B_pad // TM,)
    in_specs = [pl.BlockSpec((TM, F), lambda i: (i, 0))]
    for p in flat_params:
        # Full-array blocks with constant index maps: VMEM-resident weights.
        in_specs.append(pl.BlockSpec(p.shape, lambda i: (0, 0)))
    out_specs = pl.BlockSpec((TM, 1), lambda i: (i, 0))

    # Advisory cost estimate for the XLA scheduler.
    flops = 0
    for (W, _) in folded_hidden:
        flops += 2 * B_pad * W.shape[0] * W.shape[1]
    flops += 2 * B_pad * fc_w_row.shape[1]
    param_bytes = sum(int(p.size) * p.dtype.itemsize for p in flat_params)
    bytes_accessed = B_pad * F * 2 + B_pad * 4 + param_bytes

    # Double-buffered x tile + out tile + resident params.  Only raise the
    # scoped VMEM limit if we'd actually exceed the conservative (v5e) default.
    vmem_est = 2 * TM * F * 2 + 2 * TM * 4 + param_bytes
    vmem_limit = None
    if vmem_est > 12 * 1024 * 1024:
        vmem_limit = min(vmem_est + (4 << 20), 48 << 20)

    out = pl.pallas_call(
        kernel,
        out_shape=jax.ShapeDtypeStruct((B_pad, 1), jnp.float32),
        grid=grid,
        in_specs=in_specs,
        out_specs=out_specs,
        compiler_params=pltpu.CompilerParams(
            dimension_semantics=("parallel",),
            vmem_limit_bytes=vmem_limit),
        cost_estimate=pl.CostEstimate(
            flops=int(flops), transcendentals=0,
            bytes_accessed=int(bytes_accessed)),
    )(x, *flat_params)
    return out[:B]


# --------------------------------------------------------------------------- #
# Host-side parameter construction & BN folding
# --------------------------------------------------------------------------- #
def init_params(key, input_size, hidden_layer_ann):
    """Deterministic parameter init mirroring the shapes of a fresh ANN module."""
    dims, fc_in = _build_layer_dims(input_size, hidden_layer_ann)
    hidden_linear = []
    bn_params = []
    for (fan_in, fan_out) in dims:
        key, k_w, k_b = jax.random.split(key, 3)
        bound = 1.0 / jnp.sqrt(fan_in)
        W = jax.random.uniform(k_w, (fan_in, fan_out), jnp.float32, -bound, bound)
        b = jax.random.uniform(k_b, (1, fan_out), jnp.float32, -bound, bound)
        hidden_linear.append((W, b))
        # Fresh BatchNorm1d: gamma=1, beta=0, running_mean=0, running_var=1.
        # (A trained model's running stats/affine can be dropped in here.)
        gamma = jnp.ones((fan_out,), jnp.float32)
        beta = jnp.zeros((fan_out,), jnp.float32)
        mean = jnp.zeros((fan_out,), jnp.float32)
        var = jnp.ones((fan_out,), jnp.float32)
        bn_params.append((gamma, beta, mean, var))
    key, k_w, k_b = jax.random.split(key, 3)
    bound = 1.0 / jnp.sqrt(fc_in)
    fc_W = jax.random.uniform(k_w, (fc_in, 1), jnp.float32, -bound, bound)
    fc_b = jax.random.uniform(k_b, (1, 1), jnp.float32, -bound, bound)
    return hidden_linear, bn_params, fc_W, fc_b


def fold_bn_into_next(hidden_linear, bn_params, fc_W, fc_b, eps=1e-5):
    """Fold each eval-mode BN affine into the following Linear (exact, since
    the module order is Linear -> ReLU -> BatchNorm1d -> Dropout)."""
    folded_hidden = []
    scale = None
    shift = None
    for (W, b), (gamma, beta, mean, var) in zip(hidden_linear, bn_params):
        if scale is not None:
            b = (shift @ W)[None, :] + b
            W = scale[:, None] * W
        folded_hidden.append((W, b))
        scale = gamma / jnp.sqrt(var + eps)   # (out,)
        shift = beta - mean * scale           # (out,)
    if scale is not None:
        fc_b = (shift @ fc_W)[None, :] + fc_b  # (1, 1)
        fc_W = scale[:, None] * fc_W           # (fc_in, 1)
    fc_w_row = fc_W.T                          # (1, fc_in) for the VPU fc layer
    return folded_hidden, fc_w_row, fc_b


def reference_forward(x, hidden_linear, bn_params, fc_W, fc_b, eps=1e-5):
    """Pure-JAX f32 reference with explicit (un-folded) eval-mode BatchNorm."""
    h = x
    for (W, b), (gamma, beta, mean, var) in zip(hidden_linear, bn_params):
        h = jnp.maximum(h @ W + b, 0.0)
        h = (h - mean) / jnp.sqrt(var + eps) * gamma + beta
        # Dropout: identity at inference time.
    return h @ fc_W + fc_b


if __name__ == "__main__":
    # Config: input_size=32, hidden_layer_ann=64 -> layer widths 32->64->32->16->1
    input_size = 32
    hidden_layer_ann = 64
    batch = 200  # exercises batch tiling (TM=128 -> grid of 2) and padding/slicing

    key = jax.random.PRNGKey(0)
    key, kx = jax.random.split(key)
    x = jax.random.normal(kx, (batch, input_size), jnp.float32)

    hidden_linear, bn_params, fc_W, fc_b = init_params(key, input_size, hidden_layer_ann)
    folded_hidden, fc_w_row, fc_b_f = fold_bn_into_next(hidden_linear, bn_params, fc_W, fc_b)

    out = ann_forward_pallas(x, folded_hidden, fc_w_row, fc_b_f)
    out = jax.block_until_ready(out)

    ref = reference_forward(x, hidden_linear, bn_params, fc_W, fc_b)
    assert out.shape == (batch, 1), out.shape
    # Tolerance loosened vs pure-f32 because matmul inputs are bf16.
    assert jnp.allclose(out, ref, atol=3e-2, rtol=3e-2), (out[:4], ref[:4])

    print("KERNEL_OK")
</pallas_src>

<mosaic_0001>
module attributes {stable_mosaic.version = 11 : i64} {
  func.func @_mlp_kernel(%arg0: i32, %arg1: memref<128x32xbf16, #tpu.memory_space<vmem>>, %arg2: memref<32x64xbf16, #tpu.memory_space<vmem>>, %arg3: memref<1x64xf32, #tpu.memory_space<vmem>>, %arg4: memref<64x32xbf16, #tpu.memory_space<vmem>>, %arg5: memref<1x32xf32, #tpu.memory_space<vmem>>, %arg6: memref<32x16xbf16, #tpu.memory_space<vmem>>, %arg7: memref<1x16xf32, #tpu.memory_space<vmem>>, %arg8: memref<1x16xf32, #tpu.memory_space<vmem>>, %arg9: memref<1x1xf32, #tpu.memory_space<vmem>>, %arg10: memref<128x1xf32, #tpu.memory_space<vmem>>) attributes {dimension_semantics = [#tpu.dimension_semantics<parallel>], iteration_bounds = array<i64: 2>, scalar_prefetch = 0 : i64, scratch_operands = 0 : i64, tpu.core_type = #tpu.core_type<tc>, window_params = [{transform_indices = @transform_0, window_bounds = array<i64: 128, 32>}, {pipeline_mode = #tpu.pipeline_mode<synchronous>, transform_indices = @transform_1, window_bounds = array<i64: 32, 64>}, {pipeline_mode = #tpu.pipeline_mode<synchronous>, transform_indices = @transform_2, window_bounds = array<i64: 1, 64>}, {pipeline_mode = #tpu.pipeline_mode<synchronous>, transform_indices = @transform_3, window_bounds = array<i64: 64, 32>}, {pipeline_mode = #tpu.pipeline_mode<synchronous>, transform_indices = @transform_4, window_bounds = array<i64: 1, 32>}, {pipeline_mode = #tpu.pipeline_mode<synchronous>, transform_indices = @transform_5, window_bounds = array<i64: 32, 16>}, {pipeline_mode = #tpu.pipeline_mode<synchronous>, transform_indices = @transform_6, window_bounds = array<i64: 1, 16>}, {pipeline_mode = #tpu.pipeline_mode<synchronous>, transform_indices = @transform_7, window_bounds = array<i64: 1, 16>}, {pipeline_mode = #tpu.pipeline_mode<synchronous>, transform_indices = @transform_8, window_bounds = array<i64: 1, 1>}, {transform_indices = @transform_9, window_bounds = array<i64: 128, 1>}]} {
    %c0 = arith.constant 0 : index
    %c0_0 = arith.constant 0 : index
    %0 = vector.load %arg1[%c0, %c0_0] : memref<128x32xbf16, #tpu.memory_space<vmem>>, vector<128x32xbf16>
    %c0_1 = arith.constant 0 : index
    %c0_2 = arith.constant 0 : index
    %1 = vector.load %arg2[%c0_1, %c0_2] : memref<32x64xbf16, #tpu.memory_space<vmem>>, vector<32x64xbf16>
    %c0_3 = arith.constant 0 : index
    %c0_4 = arith.constant 0 : index
    %2 = vector.load %arg3[%c0_3, %c0_4] : memref<1x64xf32, #tpu.memory_space<vmem>>, vector<1x64xf32>
    %cst = arith.constant dense<0.000000e+00> : vector<128x64xf32>
    %3 = tpu.matmul %0, %1, %cst {dimension_numbers = #tpu.dot_dimension_numbers<[1], [0], [0], [1], [0, 0, 1, 1], [], []>} : vector<128x32xbf16>, vector<32x64xbf16>, vector<128x64xf32> -> vector<128x64xf32>
    %4 = vector.broadcast %2 : vector<1x64xf32> to vector<128x64xf32>
    %5 = arith.addf %3, %4 : vector<128x64xf32>
    %cst_5 = arith.constant 0.000000e+00 : f32
    %6 = vector.broadcast %cst_5 : f32 to vector<128x64xf32>
    %7 = arith.maximumf %5, %6 : vector<128x64xf32>
    %8 = arith.truncf %7 : vector<128x64xf32> to vector<128x64xbf16>
    %c0_6 = arith.constant 0 : index
    %c0_7 = arith.constant 0 : index
    %9 = vector.load %arg4[%c0_6, %c0_7] : memref<64x32xbf16, #tpu.memory_space<vmem>>, vector<64x32xbf16>
    %c0_8 = arith.constant 0 : index
    %c0_9 = arith.constant 0 : index
    %10 = vector.load %arg5[%c0_8, %c0_9] : memref<1x32xf32, #tpu.memory_space<vmem>>, vector<1x32xf32>
    %cst_10 = arith.constant dense<0.000000e+00> : vector<128x32xf32>
    %11 = tpu.matmul %8, %9, %cst_10 {dimension_numbers = #tpu.dot_dimension_numbers<[1], [0], [0], [1], [0, 0, 1, 1], [], []>} : vector<128x64xbf16>, vector<64x32xbf16>, vector<128x32xf32> -> vector<128x32xf32>
    %12 = vector.broadcast %10 : vector<1x32xf32> to vector<128x32xf32>
    %13 = arith.addf %11, %12 : vector<128x32xf32>
    %cst_11 = arith.constant 0.000000e+00 : f32
    %14 = vector.broadcast %cst_11 : f32 to vector<128x32xf32>
    %15 = arith.maximumf %13, %14 : vector<128x32xf32>
    %16 = arith.truncf %15 : vector<128x32xf32> to vector<128x32xbf16>
    %c0_12 = arith.constant 0 : index
    %c0_13 = arith.constant 0 : index
    %17 = vector.load %arg6[%c0_12, %c0_13] : memref<32x16xbf16, #tpu.memory_space<vmem>>, vector<32x16xbf16>
    %c0_14 = arith.constant 0 : index
    %c0_15 = arith.constant 0 : index
    %18 = vector.load %arg7[%c0_14, %c0_15] : memref<1x16xf32, #tpu.memory_space<vmem>>, vector<1x16xf32>
    %cst_16 = arith.constant dense<0.000000e+00> : vector<128x16xf32>
    %19 = tpu.matmul %16, %17, %cst_16 {dimension_numbers = #tpu.dot_dimension_numbers<[1], [0], [0], [1], [0, 0, 1, 1], [], []>} : vector<128x32xbf16>, vector<32x16xbf16>, vector<128x16xf32> -> vector<128x16xf32>
    %20 = vector.broadcast %18 : vector<1x16xf32> to vector<128x16xf32>
    %21 = arith.addf %19, %20 : vector<128x16xf32>
    %cst_17 = arith.constant 0.000000e+00 : f32
    %22 = vector.broadcast %cst_17 : f32 to vector<128x16xf32>
    %23 = arith.maximumf %21, %22 : vector<128x16xf32>
    %c0_18 = arith.constant 0 : index
    %c0_19 = arith.constant 0 : index
    %24 = vector.load %arg8[%c0_18, %c0_19] : memref<1x16xf32, #tpu.memory_space<vmem>>, vector<1x16xf32>
    %c0_20 = arith.constant 0 : index
    %c0_21 = arith.constant 0 : index
    %25 = vector.load %arg9[%c0_20, %c0_21] : memref<1x1xf32, #tpu.memory_space<vmem>>, vector<1x1xf32>
    %26 = vector.broadcast %24 : vector<1x16xf32> to vector<128x16xf32>
    %27 = arith.mulf %23, %26 : vector<128x16xf32>
    %cst_22 = arith.constant dense<0.000000e+00> : vector<128xf32>
    %28 = vector.multi_reduction <add>, %27, %cst_22 [1] : vector<128x16xf32> to vector<128xf32>
    %29 = vector.shape_cast %28 : vector<128xf32> to vector<128x1xf32>
    %30 = vector.broadcast %25 : vector<1x1xf32> to vector<128x1xf32>
    %31 = arith.addf %29, %30 : vector<128x1xf32>
    %c0_23 = arith.constant 0 : index
    %c0_24 = arith.constant 0 : index
    %32 = vector.load %arg10[%c0_23, %c0_24] : memref<128x1xf32, #tpu.memory_space<vmem>>, vector<128x1xf32>
    tpu.vector_store %arg10[%c0_23, %c0_24], %31 {strides = array<i32>} : memref<128x1xf32, #tpu.memory_space<vmem>>, vector<128x1xf32>,
    return
  }
  func.func @transform_0(%arg0: i32) -> (i32, i32) {
    %c0_i32 = arith.constant 0 : i32
    %c0_i32_0 = arith.constant 0 : i32
    return %arg0, %c0_i32 : i32, i32
  }
  func.func @transform_1(%arg0: i32) -> (i32, i32) {
    %c0_i32 = arith.constant 0 : i32
    %c0_i32_0 = arith.constant 0 : i32
    %c0_i32_1 = arith.constant 0 : i32
    return %c0_i32, %c0_i32_0 : i32, i32
  }
  func.func @transform_2(%arg0: i32) -> (i32, i32) {
    %c0_i32 = arith.constant 0 : i32
    %c0_i32_0 = arith.constant 0 : i32
    %c0_i32_1 = arith.constant 0 : i32
    return %c0_i32, %c0_i32_0 : i32, i32
  }
  func.func @transform_3(%arg0: i32) -> (i32, i32) {
    %c0_i32 = arith.constant 0 : i32
    %c0_i32_0 = arith.constant 0 : i32
    %c0_i32_1 = arith.constant 0 : i32
    return %c0_i32, %c0_i32_0 : i32, i32
  }
  func.func @transform_4(%arg0: i32) -> (i32, i32) {
    %c0_i32 = arith.constant 0 : i32
    %c0_i32_0 = arith.constant 0 : i32
    %c0_i32_1 = arith.constant 0 : i32
    return %c0_i32, %c0_i32_0 : i32, i32
  }
  func.func @transform_5(%arg0: i32) -> (i32, i32) {
    %c0_i32 = arith.constant 0 : i32
    %c0_i32_0 = arith.constant 0 : i32
    %c0_i32_1 = arith.constant 0 : i32
    return %c0_i32, %c0_i32_0 : i32, i32
  }
  func.func @transform_6(%arg0: i32) -> (i32, i32) {
    %c0_i32 = arith.constant 0 : i32
    %c0_i32_0 = arith.constant 0 : i32
    %c0_i32_1 = arith.constant 0 : i32
    return %c0_i32, %c0_i32_0 : i32, i32
  }
  func.func @transform_7(%arg0: i32) -> (i32, i32) {
    %c0_i32 = arith.constant 0 : i32
    %c0_i32_0 = arith.constant 0 : i32
    %c0_i32_1 = arith.constant 0 : i32
    return %c0_i32, %c0_i32_0 : i32, i32
  }
  func.func @transform_8(%arg0: i32) -> (i32, i32) {
    %c0_i32 = arith.constant 0 : i32
    %c0_i32_0 = arith.constant 0 : i32
    %c0_i32_1 = arith.constant 0 : i32
    return %c0_i32, %c0_i32_0 : i32, i32
  }
  func.func @transform_9(%arg0: i32) -> (i32, i32) {
    %c0_i32 = arith.constant 0 : i32
    %c0_i32_0 = arith.constant 0 : i32
    return %arg0, %c0_i32 : i32, i32
  }
}

</mosaic_0001>

<llo_original>
// kernel: tpu_custom_call.1
$region0: #{tpu_custom_call.1}
  #allocation0 [shape = 'u32[]', space=smem, size = 0x4, offset = 0x4, fixed_abs, tag = 'smem constant byte address 0x4 - core index']
  #allocation1 [shape = 'u32[144,128]{1,0:T(1,128)}', space=vmem, size = 0x12000, scoped, tag = 'internal scratch']
  #allocation2 [shape = 'f32[1,1]{1,0:T(1,128)S(1)}', space=vmem, size = 0x200, scoped, tag = 'scoped memory for tpu_custom_call.1']
  %s0 = inlined_call_operand.vmem [shape: bf16[256,32], index: 0, kind: input, shape index: {}]
  %s1 = inlined_call_operand.vmem [shape: bf16[32,64], index: 1, kind: input, shape index: {}]
  %s2 = inlined_call_operand.vmem [shape: f32[1,64], index: 2, kind: input, shape index: {}]
  %s3 = inlined_call_operand.vmem [shape: bf16[64,32], index: 3, kind: input, shape index: {}]
  %s4 = inlined_call_operand.vmem [shape: f32[1,32], index: 4, kind: input, shape index: {}]
  %s5 = inlined_call_operand.vmem [shape: bf16[32,16], index: 5, kind: input, shape index: {}]
  %s6 = inlined_call_operand.vmem [shape: f32[1,16], index: 6, kind: input, shape index: {}]
  %s7 = inlined_call_operand.vmem [shape: f32[1,16], index: 7, kind: input, shape index: {}]
  %s8 = inlined_call_operand.<no memory space> [shape: f32[1,1], index: 8, kind: input, shape index: {}]
  %s9 = inlined_call_operand.vmem [shape: f32[256,1], index: 9, kind: output, shape index: {}]
  %s10 = sld [smem:[#allocation0]]
  $region69: #{tpu_custom_call.1} parent=0
    _
  %s12 = ssub.s32 1, %s10
  %s13 = scalar_select 0, %s12, %s10
  %v14 = vstv %s8
  %15 = vst [vmem:[#allocation2] sm:$0x1] %v14
  loop: start=0, step=1, limit=4
  $region2: #{tpu_custom_call.1} parent=0 // loop_pre_header
    _
  $region3: #{tpu_custom_call.1} parent=0 // loop_header
    %s17 = sphi 0, %s21
    %p18 = scmp.ge.s32.totalorder %s17, 4
    %s27 = sphi 0, %s29
    %s30 = sphi 0, %s27
    %s31 = sphi 0, %s30
    %s47 = sphi 0, %s31
    %s51 = sphi 0, %s51
    %s53 = sphi 0, %s51
    %s54 = sphi 0, %s53
    %s68 = sphi 0, %s54
    %s72 = sphi 0, %s72
    %s74 = sphi 0, %s72
    %s75 = sphi 0, %s74
    %s89 = sphi 0, %s75
    %s93 = sphi 0, %s93
    %s95 = sphi 0, %s93
    %s96 = sphi 0, %s95
    %s110 = sphi 0, %s96
    %s114 = sphi 0, %s114
    %s116 = sphi 0, %s114
    %s117 = sphi 0, %s116
    %s131 = sphi 0, %s117
    %s135 = sphi 0, %s135
    %s137 = sphi 0, %s135
    %s138 = sphi 0, %s137
    %s152 = sphi 0, %s138
    %s156 = sphi 0, %s156
    %s158 = sphi 0, %s156
    %s159 = sphi 0, %s158
    %s173 = sphi 0, %s159
    %s177 = sphi 0, %s177
    %s179 = sphi 0, %s177
    %s180 = sphi 0, %s179
    %s194 = sphi 0, %s180
    %s198 = sphi 0, %s198
    %s200 = sphi 0, %s198
    %s201 = sphi 0, %s200
    %s215 = sphi 0, %s201
    %s221 = sphi 0, %s223
    %s224 = sphi 0, %s221
    %s225 = sphi 0, %s224
    %s241 = sphi 0, %s225
  $region4: #{tpu_custom_call.1} parent=0 // loop_header_branch
    %20 = sbr.rel (%p18) target = $region8
  $region5: #{tpu_custom_call.1} parent=0 // loop_body
    %s22 = ssub.s32 %s17, 1
    %s23 = ssub.s32 %s17, 2
    %s24 = sadd.s32 %s17, 1
    %s25 = ssub.s32 %s17, %s24
    %p26 = scmp.eq.s32.totalorder %s25, 0
    %s28 = sadd.s32 %s27, 1
    %s29 = scalar_select %p26, %s27, %s28
    %p32 = pneg %p26
    %p33 = scmp.eq.s32.totalorder %s17, 1
    %p34 = por %p32, %p33
    %p35 = scmp.ne.s32.totalorder %s27, %s30
    %p36 = scmp.eq.s32.totalorder %s17, 0
    %p37 = por %p35, %p36
    %p38 = scmp.ne.s32.totalorder %s27, %s30
    %p39 = scmp.eq.s32.totalorder %s22, 1
    %p40 = por %p38, %p39
    %p41 = scmp.ne.s32.totalorder %s30, %s31
    %p42 = scmp.eq.s32.totalorder %s22, 0
    %p43 = por %p41, %p42
    %p44 = scmp.ne.s32.totalorder %s30, %s31
    %p45 = scmp.eq.s32.totalorder %s23, 1
    %p46 = por %p44, %p45
    %p48 = scmp.ne.s32.totalorder %s31, %s47
    %p49 = scmp.eq.s32.totalorder %s23, 0
    %p50 = por %p48, %p49
    %s52 = sadd.s32 %s51, 1
    %p55 = scmp.eq.s32.totalorder %s17, 1
    %p56 = scmp.ne.s32.totalorder %s51, %s53
    %p57 = scmp.eq.s32.totalorder %s17, 0
    %p58 = por %p56, %p57
    %p59 = scmp.ne.s32.totalorder %s51, %s53
    %p60 = scmp.eq.s32.totalorder %s22, 1
    %p61 = por %p59, %p60
    %p62 = scmp.ne.s32.totalorder %s53, %s54
    %p63 = scmp.eq.s32.totalorder %s22, 0
    %p64 = por %p62, %p63
    %p65 = scmp.ne.s32.totalorder %s53, %s54
    %p66 = scmp.eq.s32.totalorder %s23, 1
    %p67 = por %p65, %p66
    %p69 = scmp.ne.s32.totalorder %s54, %s68
    %p70 = scmp.eq.s32.totalorder %s23, 0
    %p71 = por %p69, %p70
    %s73 = sadd.s32 %s72, 1
    %p76 = scmp.eq.s32.totalorder %s17, 1
    %p77 = scmp.ne.s32.totalorder %s72, %s74
    %p78 = scmp.eq.s32.totalorder %s17, 0
    %p79 = por %p77, %p78
    %p80 = scmp.ne.s32.totalorder %s72, %s74
    %p81 = scmp.eq.s32.totalorder %s22, 1
    %p82 = por %p80, %p81
    %p83 = scmp.ne.s32.totalorder %s74, %s75
    %p84 = scmp.eq.s32.totalorder %s22, 0
    %p85 = por %p83, %p84
    %p86 = scmp.ne.s32.totalorder %s74, %s75
    %p87 = scmp.eq.s32.totalorder %s23, 1
    %p88 = por %p86, %p87
    %p90 = scmp.ne.s32.totalorder %s75, %s89
    %p91 = scmp.eq.s32.totalorder %s23, 0
    %p92 = por %p90, %p91
    %s94 = sadd.s32 %s93, 1
    %p97 = scmp.eq.s32.totalorder %s17, 1
    %p98 = scmp.ne.s32.totalorder %s93, %s95
    %p99 = scmp.eq.s32.totalorder %s17, 0
    %p100 = por %p98, %p99
    %p101 = scmp.ne.s32.totalorder %s93, %s95
    %p102 = scmp.eq.s32.totalorder %s22, 1
    %p103 = por %p101, %p102
    %p104 = scmp.ne.s32.totalorder %s95, %s96
    %p105 = scmp.eq.s32.totalorder %s22, 0
    %p106 = por %p104, %p105
    %p107 = scmp.ne.s32.totalorder %s95, %s96
    %p108 = scmp.eq.s32.totalorder %s23, 1
    %p109 = por %p107, %p108
    %p111 = scmp.ne.s32.totalorder %s96, %s110
    %p112 = scmp.eq.s32.totalorder %s23, 0
    %p113 = por %p111, %p112
    %s115 = sadd.s32 %s114, 1
    %p118 = scmp.eq.s32.totalorder %s17, 1
    %p119 = scmp.ne.s32.totalorder %s114, %s116
    %p120 = scmp.eq.s32.totalorder %s17, 0
    %p121 = por %p119, %p120
    %p122 = scmp.ne.s32.totalorder %s114, %s116
    %p123 = scmp.eq.s32.totalorder %s22, 1
    %p124 = por %p122, %p123
    %p125 = scmp.ne.s32.totalorder %s116, %s117
    %p126 = scmp.eq.s32.totalorder %s22, 0
    %p127 = por %p125, %p126
    %p128 = scmp.ne.s32.totalorder %s116, %s117
    %p129 = scmp.eq.s32.totalorder %s23, 1
    %p130 = por %p128, %p129
    %p132 = scmp.ne.s32.totalorder %s117, %s131
    %p133 = scmp.eq.s32.totalorder %s23, 0
    %p134 = por %p132, %p133
    %s136 = sadd.s32 %s135, 1
    %p139 = scmp.eq.s32.totalorder %s17, 1
    %p140 = scmp.ne.s32.totalorder %s135, %s137
    %p141 = scmp.eq.s32.totalorder %s17, 0
    %p142 = por %p140, %p141
    %p143 = scmp.ne.s32.totalorder %s135, %s137
    %p144 = scmp.eq.s32.totalorder %s22, 1
    %p145 = por %p143, %p144
    %p146 = scmp.ne.s32.totalorder %s137, %s138
    %p147 = scmp.eq.s32.totalorder %s22, 0
    %p148 = por %p146, %p147
    %p149 = scmp.ne.s32.totalorder %s137, %s138
    %p150 = scmp.eq.s32.totalorder %s23, 1
    %p151 = por %p149, %p150
    %p153 = scmp.ne.s32.totalorder %s138, %s152
    %p154 = scmp.eq.s32.totalorder %s23, 0
    %p155 = por %p153, %p154
    %s157 = sadd.s32 %s156, 1
    %p160 = scmp.eq.s32.totalorder %s17, 1
    %p161 = scmp.ne.s32.totalorder %s156, %s158
    %p162 = scmp.eq.s32.totalorder %s17, 0
    %p163 = por %p161, %p162
    %p164 = scmp.ne.s32.totalorder %s156, %s158
    %p165 = scmp.eq.s32.totalorder %s22, 1
    %p166 = por %p164, %p165
    %p167 = scmp.ne.s32.totalorder %s158, %s159
    %p168 = scmp.eq.s32.totalorder %s22, 0
    %p169 = por %p167, %p168
    %p170 = scmp.ne.s32.totalorder %s158, %s159
    %p171 = scmp.eq.s32.totalorder %s23, 1
    %p172 = por %p170, %p171
    %p174 = scmp.ne.s32.totalorder %s159, %s173
    %p175 = scmp.eq.s32.totalorder %s23, 0
    %p176 = por %p174, %p175
    %s178 = sadd.s32 %s177, 1
    %p181 = scmp.eq.s32.totalorder %s17, 1
    %p182 = scmp.ne.s32.totalorder %s177, %s179
    %p183 = scmp.eq.s32.totalorder %s17, 0
    %p184 = por %p182, %p183
    %p185 = scmp.ne.s32.totalorder %s177, %s179
    %p186 = scmp.eq.s32.totalorder %s22, 1
    %p187 = por %p185, %p186
    %p188 = scmp.ne.s32.totalorder %s179, %s180
    %p189 = scmp.eq.s32.totalorder %s22, 0
    %p190 = por %p188, %p189
    %p191 = scmp.ne.s32.totalorder %s179, %s180
    %p192 = scmp.eq.s32.totalorder %s23, 1
    %p193 = por %p191, %p192
    %p195 = scmp.ne.s32.totalorder %s180, %s194
    %p196 = scmp.eq.s32.totalorder %s23, 0
    %p197 = por %p195, %p196
    %s199 = sadd.s32 %s198, 1
    %p202 = scmp.eq.s32.totalorder %s17, 1
    %p203 = scmp.ne.s32.totalorder %s198, %s200
    %p204 = scmp.eq.s32.totalorder %s17, 0
    %p205 = por %p203, %p204
    %p206 = scmp.ne.s32.totalorder %s198, %s200
    %p207 = scmp.eq.s32.totalorder %s22, 1
    %p208 = por %p206, %p207
    %p209 = scmp.ne.s32.totalorder %s200, %s201
    %p210 = scmp.eq.s32.totalorder %s22, 0
    %p211 = por %p209, %p210
    %p212 = scmp.ne.s32.totalorder %s200, %s201
    %p213 = scmp.eq.s32.totalorder %s23, 1
    %p214 = por %p212, %p213
    %p216 = scmp.ne.s32.totalorder %s201, %s215
    %p217 = scmp.eq.s32.totalorder %s23, 0
    %p218 = por %p216, %p217
    %s219 = ssub.s32 %s17, %s24
    %p220 = scmp.eq.s32.totalorder %s219, 0
    %s222 = sadd.s32 %s221, 1
    %s223 = scalar_select %p220, %s221, %s222
    %p226 = pneg %p220
    %p227 = scmp.eq.s32.totalorder %s17, 1
    %p228 = por %p226, %p227
    %p229 = scmp.ne.s32.totalorder %s221, %s224
    %p230 = scmp.eq.s32.totalorder %s17, 0
    %p231 = por %p229, %p230
    %p232 = scmp.ne.s32.totalorder %s221, %s224
    %p233 = scmp.eq.s32.totalorder %s22, 1
    %p234 = por %p232, %p233
    %p235 = scmp.ne.s32.totalorder %s224, %s225
    %p236 = scmp.eq.s32.totalorder %s22, 0
    %p237 = por %p235, %p236
    %p238 = scmp.ne.s32.totalorder %s224, %s225
    %p239 = scmp.eq.s32.totalorder %s23, 1
    %p240 = por %p238, %p239
    %p242 = scmp.ne.s32.totalorder %s225, %s241
    %p243 = scmp.eq.s32.totalorder %s23, 0
    %p244 = por %p242, %p243
    %p245 = scmp.le.s32.totalorder 1, %s17
    %p246 = scmp.lt.s32.totalorder %s17, 3
    %p247 = pnand %p245, %p246
    %p248 = pneg %p247
    // Predicated region
    $region9: #{tpu_custom_call.1} parent=5 // pred_check
      _
    $region10: #{tpu_custom_call.1} parent=5 // pred_check_branch
      %250 = sbr.rel (%p247) target = $region12
    $region11: #{tpu_custom_call.1} parent=5 // pred_region
      %s251 = ssub.s32 %s17, 1
      // Predicated region
      $region13: #{tpu_custom_call.1} parent=11 // pred_check
        %p252 = pneg %p64
      $region14: #{tpu_custom_call.1} parent=11 // pred_check_branch
        %254 = sbr.rel (%p252) target = $region16
      $region15: #{tpu_custom_call.1} parent=11 // pred_region
        _
      $region16: #{tpu_custom_call.1} parent=11 // pred_fallthru
        _
      // Predicated region
      $region17: #{tpu_custom_call.1} parent=11 // pred_check
        %p255 = pneg %p85
      $region18: #{tpu_custom_call.1} parent=11 // pred_check_branch
        %257 = sbr.rel (%p255) target = $region20
      $region19: #{tpu_custom_call.1} parent=11 // pred_region
        _
      $region20: #{tpu_custom_call.1} parent=11 // pred_fallthru
        _
      // Predicated region
      $region21: #{tpu_custom_call.1} parent=11 // pred_check
        %p258 = pneg %p106
      $region22: #{tpu_custom_call.1} parent=11 // pred_check_branch
        %260 = sbr.rel (%p258) target = $region24
      $region23: #{tpu_custom_call.1} parent=11 // pred_region
        _
      $region24: #{tpu_custom_call.1} parent=11 // pred_fallthru
        _
      // Predicated region
      $region25: #{tpu_custom_call.1} parent=11 // pred_check
        %p261 = pneg %p127
      $region26: #{tpu_custom_call.1} parent=11 // pred_check_branch
        %263 = sbr.rel (%p261) target = $region28
      $region27: #{tpu_custom_call.1} parent=11 // pred_region
        _
      $region28: #{tpu_custom_call.1} parent=11 // pred_fallthru
        _
      // Predicated region
      $region29: #{tpu_custom_call.1} parent=11 // pred_check
        %p264 = pneg %p148
      $region30: #{tpu_custom_call.1} parent=11 // pred_check_branch
        %266 = sbr.rel (%p264) target = $region32
      $region31: #{tpu_custom_call.1} parent=11 // pred_region
        _
      $region32: #{tpu_custom_call.1} parent=11 // pred_fallthru
        _
      // Predicated region
      $region33: #{tpu_custom_call.1} parent=11 // pred_check
        %p267 = pneg %p169
      $region34: #{tpu_custom_call.1} parent=11 // pred_check_branch
        %269 = sbr.rel (%p267) target = $region36
      $region35: #{tpu_custom_call.1} parent=11 // pred_region
        _
      $region36: #{tpu_custom_call.1} parent=11 // pred_fallthru
        _
      // Predicated region
      $region37: #{tpu_custom_call.1} parent=11 // pred_check
        %p270 = pneg %p190
      $region38: #{tpu_custom_call.1} parent=11 // pred_check_branch
        %272 = sbr.rel (%p270) target = $region40
      $region39: #{tpu_custom_call.1} parent=11 // pred_region
        _
      $region40: #{tpu_custom_call.1} parent=11 // pred_fallthru
        _
      // Predicated region
      $region41: #{tpu_custom_call.1} parent=11 // pred_check
        %p273 = pneg %p211
      $region42: #{tpu_custom_call.1} parent=11 // pred_check_branch
        %275 = sbr.rel (%p273) target = $region44
      $region43: #{tpu_custom_call.1} parent=11 // pred_region
        _
      $region44: #{tpu_custom_call.1} parent=11 // pred_fallthru
        _
    $region12: #{tpu_custom_call.1} parent=5 // pred_fallthru
      _
    %p276 = scmp.lt.s32.totalorder %s17, 2
    // Predicated region
    $region45: #{tpu_custom_call.1} parent=5 // pred_check
      %p277 = pneg %p276
    $region46: #{tpu_custom_call.1} parent=5 // pred_check_branch
      %279 = sbr.rel (%p277) target = $region48
    $region47: #{tpu_custom_call.1} parent=5 // pred_region
      // Predicated region
      $region49: #{tpu_custom_call.1} parent=47 // pred_check
        %p280 = pneg %p37
      $region50: #{tpu_custom_call.1} parent=47 // pred_check_branch
        %282 = sbr.rel (%p280) target = $region52
      $region51: #{tpu_custom_call.1} parent=47 // pred_region
        %s283 = smul.u32 16, %s17
        %p284 = scmp.lt.s32.totalorder %s283, 31
        %s285 = scalar_select %p284, %s283, 31
        %s286 = smul.addr %s285, 4
        %s287 = scalar_lea.vmem %s0, %s286
        %s288 = smul.u32 16, %s17
      $region52: #{tpu_custom_call.1} parent=47 // pred_fallthru
        _
    $region48: #{tpu_custom_call.1} parent=5 // pred_fallthru
      _
    %p289 = scmp.le.s32.totalorder 1, %s17
    %p290 = scmp.lt.s32.totalorder %s17, 3
    %p291 = pnand %p289, %p290
    %p292 = pneg %p291
    // Predicated region
    $region53: #{tpu_custom_call.1} parent=5 // pred_check
      _
    $region54: #{tpu_custom_call.1} parent=5 // pred_check_branch
      %294 = sbr.rel (%p291) target = $region56
    $region55: #{tpu_custom_call.1} parent=5 // pred_region
      %s295 = ssub.s32 %s17, 1
      %s296 = smul.u32 16, %s22
      %p297 = scmp.lt.s32.totalorder %s296, 31
      %s298 = scalar_select %p297, %s296, 31
      %s299 = smul.addr %s298, 4
      %s300 = scalar_lea.vmem %s0, %s299
      %p301 = pneg %p43
      %p302 = pneg %p40
      %p303 = pneg %p64
      %p304 = pneg %p61
      %p305 = pneg %p85
      %p306 = pneg %p82
      %p307 = pneg %p106
      %p308 = pneg %p103
      %p309 = pneg %p127
      %p310 = pneg %p124
      %p311 = pneg %p148
      %p312 = pneg %p145
      %p313 = pneg %p169
      %p314 = pneg %p166
      %p315 = pneg %p190
      %p316 = pneg %p187
      %p317 = pneg %p211
      %p318 = pneg %p208
      %p319 = pneg %p237
      %p320 = pneg %p234
      %s321 = smul.u32 16, %s22
      %p322 = scmp.lt.s32.totalorder %s321, 31
      %s323 = scalar_select %p322, %s321, 31
      %s324 = smul.addr %s323, 8
      %s325 = scalar_lea.vmem %s9, %s324
      %s326 = smul.u32 16, %s22
      %p327 = scmp.lt.s32.totalorder %s326, 31
      %s328 = scalar_select %p327, %s326, 31
      %s329 = smul.addr %s328, 4
      %s330 = scalar_lea.vmem %s0, %s329
      %s331 = smul.u32 16, %s22
      %s332 = smul.u32 16, %s22
      %p333 = scmp.lt.s32.totalorder %s332, 31
      %s334 = scalar_select %p333, %s332, 31
      %s335 = smul.addr %s334, 8
      %s336 = scalar_lea.vmem %s9, %s335
      %s337 = smul.u32 16, %s22
      %v339 = vld [vmem:[%s330] sm:$0xf]
      %v340 = vld [vmem:[%s330 + $0x4] sm:$0xf]
      %v341 = vld [vmem:[%s330 + $0x8] sm:$0xf]
      %v342 = vld [vmem:[%s330 + $0xc] sm:$0xf]
      %v343 = vld [vmem:[%s330 + $0x10] sm:$0xf]
      %v344 = vld [vmem:[%s330 + $0x14] sm:$0xf]
      %v345 = vld [vmem:[%s330 + $0x18] sm:$0xf]
      %v346 = vld [vmem:[%s330 + $0x1c] sm:$0xf]
      %v347 = vld [vmem:[%s330 + $0x20] sm:$0xf]
      %v348 = vld [vmem:[%s330 + $0x24] sm:$0xf]
      %v349 = vld [vmem:[%s330 + $0x28] sm:$0xf]
      %v350 = vld [vmem:[%s330 + $0x2c] sm:$0xf]
      %v351 = vld [vmem:[%s330 + $0x30] sm:$0xf]
      %v352 = vld [vmem:[%s330 + $0x34] sm:$0xf]
      %v353 = vld [vmem:[%s330 + $0x38] sm:$0xf]
      %v354 = vld [vmem:[%s330 + $0x3c] sm:$0xf]
      %v355 = vld [vmem:[%s1] sm:$0xf]
      %v356 = vld [vmem:[%s1 + $0x4] sm:$0xf]
      %v357 = vld [vmem:[%s1 + $0x8] sm:$0xf]
      %v358 = vld [vmem:[%s1 + $0xc] sm:$0xf]
      %v359 = vld [vmem:[%s2] sm:$0x1]
      %v361 = vlaneseq
      %v362 = vshrl.u32 %v361, 7
      %v363 = vsub.s32 0, %v362
      %v364 = vrot.slane %v359, %v363
      %v382 = vunpack.c.l.b16 %v339
      %v383 = vunpack.c.l.b16 %v340
      %v384 = vunpack.c.l.b16 %v341
      %v385 = vunpack.c.l.b16 %v342
      %v386 = vunpack.c.l.b16 %v343
      %v387 = vunpack.c.l.b16 %v344
      %v388 = vunpack.c.l.b16 %v345
      %v389 = vunpack.c.l.b16 %v346
      %v390 = vunpack.c.l.b16 %v347
      %v391 = vunpack.c.l.b16 %v348
      %v392 = vunpack.c.l.b16 %v349
      %v393 = vunpack.c.l.b16 %v350
      %v394 = vunpack.c.l.b16 %v351
      %v395 = vunpack.c.l.b16 %v352
      %v396 = vunpack.c.l.b16 %v353
      %v397 = vunpack.c.l.b16 %v354
      %v398 = vpack.c.b16 %v383, %v382
      %v399 = vpack.c.b16 %v385, %v384
      %v400 = vpack.c.b16 %v387, %v386
      %v401 = vpack.c.b16 %v389, %v388
      %v402 = vpack.c.b16 %v391, %v390
      %v403 = vpack.c.b16 %v393, %v392
      %v404 = vpack.c.b16 %v395, %v394
      %v405 = vpack.c.b16 %v397, %v396
      %v410 = vunpack.c.l.b16 %v355
      %v411 = vunpack.c.l.b16 %v356
      %v412 = vunpack.c.l.b16 %v357
      %v413 = vunpack.c.l.b16 %v358
      %v414 = vpack.c.b16 %v411, %v410
      %v415 = vpack.c.b16 %v413, %v412
      %vm418 = vcmask 261120
      %v420 = vsel %vm418, %v398, 0
      %v423 = vsel %vm418, %v399, 0
      %v426 = vsel %vm418, %v400, 0
      %v429 = vsel %vm418, %v401, 0
      %v432 = vsel %vm418, %v402, 0
      %v435 = vsel %vm418, %v403, 0
      %v438 = vsel %vm418, %v404, 0
      %v441 = vsel %vm418, %v405, 0
      %443 = vmatprep.subr.bf16.mxu0 0
      %444 = vmatpush1.bf16.msra.mxu0 %v414
      %445 = vmatprep.subr.bf16.mxu0 0
      %446 = vmatpush1.bf16.msra.mxu0 %v415
      %447 = vmatprep.subr.bf16.mxu0 0
      %448 = vmatpush1.bf16.msra.mxu0 0
      %449 = vmatprep.subr.bf16.mxu0 0
      %450 = vmatpush1.bf16.msra.mxu0 0
      %451 = vmatprep.subr.bf16.mxu0 0
      %452 = vmatpush1.bf16.msra.mxu0 0
      %453 = vmatprep.subr.bf16.mxu0 0
      %454 = vmatpush1.bf16.msra.mxu0 0
      %455 = vmatprep.subr.bf16.mxu0 0
      %456 = vmatpush1.bf16.msra.mxu0 0
      %457 = vmatprep.subr.bf16.mxu0 0
      %458 = vmatpush1.bf16.msra.mxu0 0
      %459 = vmatprep.subr.bf16.mxu0 0
      %460 = vmatpush1.bf16.msra.mxu0 0
      %461 = vmatprep.subr.bf16.mxu0 0
      %462 = vmatpush1.bf16.msra.mxu0 0
      %463 = vmatprep.subr.bf16.mxu0 0
      %464 = vmatpush1.bf16.msra.mxu0 0
      %465 = vmatprep.subr.bf16.mxu0 0
      %466 = vmatpush1.bf16.msra.mxu0 0
      %467 = vmatprep.subr.bf16.mxu0 0
      %468 = vmatpush1.bf16.msra.mxu0 0
      %469 = vmatprep.subr.bf16.mxu0 0
      %470 = vmatpush1.bf16.msra.mxu0 0
      %471 = vmatprep.subr.bf16.mxu0 0
      %472 = vmatpush1.bf16.msra.mxu0 0
      %473 = vmatprep.subr.bf16.mxu0 0
      %474 = vmatpush1.bf16.msra.mxu0 0
      %475 = vmatprep.mubr.bf16.mxu0 0
      %476 = vmatmul.mubr.bf16.gmra.mrb[0].mxu0 %v420
      %v477 = vpop.f32.mrb[0].mxu0
      %v478 = vadd.f32 %v364, %v477
      %v479 = vpop.f32.mrb[0].mxu0
      %v480 = vpop.f32.mrb[0].mxu0
      %v481 = vadd.f32 %v364, %v480
      %v482 = vpop.f32.mrb[0].mxu0
      %483 = vmatprep.mubr.bf16.mxu0 0
      %484 = vmatmul.mubr.bf16.gmra.mrb[0].mxu0 %v423
      %v485 = vpop.f32.mrb[0].mxu0
      %v486 = vadd.f32 %v364, %v485
      %v487 = vpop.f32.mrb[0].mxu0
      %v488 = vpop.f32.mrb[0].mxu0
      %v489 = vadd.f32 %v364, %v488
      %v490 = vpop.f32.mrb[0].mxu0
      %491 = vmatprep.mubr.bf16.mxu0 0
      %492 = vmatmul.mubr.bf16.gmra.mrb[0].mxu0 %v426
      %v493 = vpop.f32.mrb[0].mxu0
      %v494 = vadd.f32 %v364, %v493
      %v495 = vpop.f32.mrb[0].mxu0
      %v496 = vpop.f32.mrb[0].mxu0
      %v497 = vadd.f32 %v364, %v496
      %v498 = vpop.f32.mrb[0].mxu0
      %499 = vmatprep.mubr.bf16.mxu0 0
      %500 = vmatmul.mubr.bf16.gmra.mrb[0].mxu0 %v429
      %v501 = vpop.f32.mrb[0].mxu0
      %v502 = vadd.f32 %v364, %v501
      %v503 = vpop.f32.mrb[0].mxu0
      %v504 = vpop.f32.mrb[0].mxu0
      %v505 = vadd.f32 %v364, %v504
      %v506 = vpop.f32.mrb[0].mxu0
      %507 = vmatprep.mubr.bf16.mxu0 0
      %508 = vmatmul.mubr.bf16.gmra.mrb[0].mxu0 %v432
      %v509 = vpop.f32.mrb[0].mxu0
      %v510 = vadd.f32 %v364, %v509
      %v511 = vpop.f32.mrb[0].mxu0
      %v512 = vpop.f32.mrb[0].mxu0
      %v513 = vadd.f32 %v364, %v512
      %v514 = vpop.f32.mrb[0].mxu0
      %515 = vmatprep.mubr.bf16.mxu0 0
      %516 = vmatmul.mubr.bf16.gmra.mrb[0].mxu0 %v435
      %v517 = vpop.f32.mrb[0].mxu0
      %v518 = vadd.f32 %v364, %v517
      %v519 = vpop.f32.mrb[0].mxu0
      %v520 = vpop.f32.mrb[0].mxu0
      %v521 = vadd.f32 %v364, %v520
      %v522 = vpop.f32.mrb[0].mxu0
      %523 = vmatprep.mubr.bf16.mxu0 0
      %524 = vmatmul.mubr.bf16.gmra.mrb[0].mxu0 %v438
      %v525 = vpop.f32.mrb[0].mxu0
      %v526 = vadd.f32 %v364, %v525
      %v527 = vpop.f32.mrb[0].mxu0
      %v528 = vpop.f32.mrb[0].mxu0
      %v529 = vadd.f32 %v364, %v528
      %v530 = vpop.f32.mrb[0].mxu0
      %531 = vmatprep.mubr.bf16.mxu0 0
      %532 = vmatmul.mubr.bf16.gmra.mrb[0].mxu0 %v441
      %v533 = vpop.f32.mrb[0].mxu0
      %v534 = vadd.f32 %v364, %v533
      %v535 = vpop.f32.mrb[0].mxu0
      %v536 = vpop.f32.mrb[0].mxu0
      %v537 = vadd.f32 %v364, %v536
      %v538 = vpop.f32.mrb[0].mxu0
      %539 = vdwg.mxu0
      %v540 = vmax.f32 %v478, 0.0
      %v541 = vmax.f32 %v481, 0.0
      %v542 = vmax.f32 %v486, 0.0
      %v543 = vmax.f32 %v489, 0.0
      %v544 = vmax.f32 %v494, 0.0
      %v545 = vmax.f32 %v497, 0.0
      %v546 = vmax.f32 %v502, 0.0
      %v547 = vmax.f32 %v505, 0.0
      %v548 = vmax.f32 %v510, 0.0
      %v549 = vmax.f32 %v513, 0.0
      %v550 = vmax.f32 %v518, 0.0
      %v551 = vmax.f32 %v521, 0.0
      %v552 = vmax.f32 %v526, 0.0
      %v553 = vmax.f32 %v529, 0.0
      %v554 = vmax.f32 %v534, 0.0
      %v555 = vmax.f32 %v537, 0.0
      %v556 = vpack.c.bf16 %v541, %v540
      %v557 = vpack.c.bf16 %v543, %v542
      %v558 = vpack.c.bf16 %v545, %v544
      %v559 = vpack.c.bf16 %v547, %v546
      %v560 = vpack.c.bf16 %v549, %v548
      %v561 = vpack.c.bf16 %v551, %v550
      %v562 = vpack.c.bf16 %v553, %v552
      %v563 = vpack.c.bf16 %v555, %v554
      %v564 = vld [vmem:[%s3] sm:$0xf]
      %v565 = vld [vmem:[%s3 + $0x4] sm:$0xf]
      %v566 = vld [vmem:[%s3 + $0x8] sm:$0xf]
      %v567 = vld [vmem:[%s3 + $0xc] sm:$0xf]
      %v568 = vld [vmem:[%s3 + $0x10] sm:$0xf]
      %v569 = vld [vmem:[%s3 + $0x14] sm:$0xf]
      %v570 = vld [vmem:[%s3 + $0x18] sm:$0xf]
      %v571 = vld [vmem:[%s3 + $0x1c] sm:$0xf]
      %v572 = vld [vmem:[%s4] sm:$0x1]
      %v574 = vlaneseq
      %v575 = vshrl.u32 %v574, 7
      %v576 = vsub.s32 0, %v575
      %v577 = vrot.slane %v572, %v576
      %v587 = vunpack.c.l.b16 %v564
      %v588 = vunpack.c.l.b16 %v565
      %v589 = vunpack.c.l.b16 %v566
      %v590 = vunpack.c.l.b16 %v567
      %v591 = vunpack.c.l.b16 %v568
      %v592 = vunpack.c.l.b16 %v569
      %v593 = vunpack.c.l.b16 %v570
      %v594 = vunpack.c.l.b16 %v571
      %v595 = vpack.c.b16 %v588, %v587
      %v596 = vpack.c.b16 %v590, %v589
      %v597 = vpack.c.b16 %v592, %v591
      %v598 = vpack.c.b16 %v594, %v593
      %vm603 = vcmask 523264
      %v605 = vsel %vm603, %v556, 0
      %v608 = vsel %vm603, %v557, 0
      %v611 = vsel %vm603, %v558, 0
      %v614 = vsel %vm603, %v559, 0
      %v617 = vsel %vm603, %v560, 0
      %v620 = vsel %vm603, %v561, 0
      %v623 = vsel %vm603, %v562, 0
      %v626 = vsel %vm603, %v563, 0
      %628 = vmatprep.subr.bf16.mxu0 0
      %629 = vmatpush1.bf16.msra.mxu0 %v595
      %630 = vmatprep.subr.bf16.mxu0 0
      %631 = vmatpush1.bf16.msra.mxu0 %v596
      %632 = vmatprep.subr.bf16.mxu0 0
      %633 = vmatpush1.bf16.msra.mxu0 %v597
      %634 = vmatprep.subr.bf16.mxu0 0
      %635 = vmatpush1.bf16.msra.mxu0 %v598
      %636 = vmatprep.subr.bf16.mxu0 0
      %637 = vmatpush1.bf16.msra.mxu0 0
      %638 = vmatprep.subr.bf16.mxu0 0
      %639 = vmatpush1.bf16.msra.mxu0 0
      %640 = vmatprep.subr.bf16.mxu0 0
      %641 = vmatpush1.bf16.msra.mxu0 0
      %642 = vmatprep.subr.bf16.mxu0 0
      %643 = vmatpush1.bf16.msra.mxu0 0
      %644 = vmatprep.subr.bf16.mxu0 0
      %645 = vmatpush1.bf16.msra.mxu0 0
      %646 = vmatprep.subr.bf16.mxu0 0
      %647 = vmatpush1.bf16.msra.mxu0 0
      %648 = vmatprep.subr.bf16.mxu0 0
      %649 = vmatpush1.bf16.msra.mxu0 0
      %650 = vmatprep.subr.bf16.mxu0 0
      %651 = vmatpush1.bf16.msra.mxu0 0
      %652 = vmatprep.subr.bf16.mxu0 0
      %653 = vmatpush1.bf16.msra.mxu0 0
      %654 = vmatprep.subr.bf16.mxu0 0
      %655 = vmatpush1.bf16.msra.mxu0 0
      %656 = vmatprep.subr.bf16.mxu0 0
      %657 = vmatpush1.bf16.msra.mxu0 0
      %658 = vmatprep.subr.bf16.mxu0 0
      %659 = vmatpush1.bf16.msra.mxu0 0
      %660 = vmatprep.mubr.bf16.mxu0 0
      %661 = vmatmul.mubr.bf16.gmra.mrb[0].mxu0 %v605
      %v662 = vpop.f32.mrb[0].mxu0
      %v663 = vadd.f32 %v577, %v662
      %v664 = vpop.f32.mrb[0].mxu0
      %v665 = vpop.f32.mrb[0].mxu0
      %v666 = vadd.f32 %v577, %v665
      %v667 = vpop.f32.mrb[0].mxu0
      %668 = vmatprep.mubr.bf16.mxu0 0
      %669 = vmatmul.mubr.bf16.gmra.mrb[0].mxu0 %v608
      %v670 = vpop.f32.mrb[0].mxu0
      %v671 = vadd.f32 %v577, %v670
      %v672 = vpop.f32.mrb[0].mxu0
      %v673 = vpop.f32.mrb[0].mxu0
      %v674 = vadd.f32 %v577, %v673
      %v675 = vpop.f32.mrb[0].mxu0
      %676 = vmatprep.mubr.bf16.mxu0 0
      %677 = vmatmul.mubr.bf16.gmra.mrb[0].mxu0 %v611
      %v678 = vpop.f32.mrb[0].mxu0
      %v679 = vadd.f32 %v577, %v678
      %v680 = vpop.f32.mrb[0].mxu0
      %v681 = vpop.f32.mrb[0].mxu0
      %v682 = vadd.f32 %v577, %v681
      %v683 = vpop.f32.mrb[0].mxu0
      %684 = vmatprep.mubr.bf16.mxu0 0
      %685 = vmatmul.mubr.bf16.gmra.mrb[0].mxu0 %v614
      %v686 = vpop.f32.mrb[0].mxu0
      %v687 = vadd.f32 %v577, %v686
      %v688 = vpop.f32.mrb[0].mxu0
      %v689 = vpop.f32.mrb[0].mxu0
      %v690 = vadd.f32 %v577, %v689
      %v691 = vpop.f32.mrb[0].mxu0
      %692 = vmatprep.mubr.bf16.mxu0 0
      %693 = vmatmul.mubr.bf16.gmra.mrb[0].mxu0 %v617
      %v694 = vpop.f32.mrb[0].mxu0
      %v695 = vadd.f32 %v577, %v694
      %v696 = vpop.f32.mrb[0].mxu0
      %v697 = vpop.f32.mrb[0].mxu0
      %v698 = vadd.f32 %v577, %v697
      %v699 = vpop.f32.mrb[0].mxu0
      %700 = vmatprep.mubr.bf16.mxu0 0
      %701 = vmatmul.mubr.bf16.gmra.mrb[0].mxu0 %v620
      %v702 = vpop.f32.mrb[0].mxu0
      %v703 = vadd.f32 %v577, %v702
      %v704 = vpop.f32.mrb[0].mxu0
      %v705 = vpop.f32.mrb[0].mxu0
      %v706 = vadd.f32 %v577, %v705
      %v707 = vpop.f32.mrb[0].mxu0
      %708 = vmatprep.mubr.bf16.mxu0 0
      %709 = vmatmul.mubr.bf16.gmra.mrb[0].mxu0 %v623
      %v710 = vpop.f32.mrb[0].mxu0
      %v711 = vadd.f32 %v577, %v710
      %v712 = vpop.f32.mrb[0].mxu0
      %v713 = vpop.f32.mrb[0].mxu0
      %v714 = vadd.f32 %v577, %v713
      %v715 = vpop.f32.mrb[0].mxu0
      %716 = vmatprep.mubr.bf16.mxu0 0
      %717 = vmatmul.mubr.bf16.gmra.mrb[0].mxu0 %v626
      %v718 = vpop.f32.mrb[0].mxu0
      %v719 = vadd.f32 %v577, %v718
      %v720 = vpop.f32.mrb[0].mxu0
      %v721 = vpop.f32.mrb[0].mxu0
      %v722 = vadd.f32 %v577, %v721
      %v723 = vpop.f32.mrb[0].mxu0
      %724 = vdwg.mxu0
      %v725 = vmax.f32 %v663, 0.0
      %v726 = vmax.f32 %v666, 0.0
      %v727 = vmax.f32 %v671, 0.0
      %v728 = vmax.f32 %v674, 0.0
      %v729 = vmax.f32 %v679, 0.0
      %v730 = vmax.f32 %v682, 0.0
      %v731 = vmax.f32 %v687, 0.0
      %v732 = vmax.f32 %v690, 0.0
      %v733 = vmax.f32 %v695, 0.0
      %v734 = vmax.f32 %v698, 0.0
      %v735 = vmax.f32 %v703, 0.0
      %v736 = vmax.f32 %v706, 0.0
      %v737 = vmax.f32 %v711, 0.0
      %v738 = vmax.f32 %v714, 0.0
      %v739 = vmax.f32 %v719, 0.0
      %v740 = vmax.f32 %v722, 0.0
      %v741 = vpack.c.bf16 %v726, %v725
      %v742 = vpack.c.bf16 %v728, %v727
      %v743 = vpack.c.bf16 %v730, %v729
      %v744 = vpack.c.bf16 %v732, %v731
      %v745 = vpack.c.bf16 %v734, %v733
      %v746 = vpack.c.bf16 %v736, %v735
      %v747 = vpack.c.bf16 %v738, %v737
      %v748 = vpack.c.bf16 %v740, %v739
      %v749 = vld [vmem:[%s5] sm:$0xf]
      %v750 = vld [vmem:[%s5 + $0x4] sm:$0xf]
      %v751 = vld [vmem:[%s5 + $0x8] sm:$0xf]
      %v752 = vld [vmem:[%s5 + $0xc] sm:$0xf]
      %v753 = vld [vmem:[%s6] sm:$0x1]
      %v755 = vlaneseq
      %v756 = vshrl.u32 %v755, 7
      %v757 = vsub.s32 0, %v756
      %v758 = vrot.slane %v753, %v757
      %v764 = vunpack.c.l.b16 %v749
      %v765 = vunpack.c.l.b16 %v750
      %v766 = vunpack.c.l.b16 %v751
      %v767 = vunpack.c.l.b16 %v752
      %v768 = vpack.c.b16 %v765, %v764
      %v769 = vpack.c.b16 %v767, %v766
      %v773 = vsel %vm418, %v741, 0
      %v776 = vsel %vm418, %v742, 0
      %v779 = vsel %vm418, %v743, 0
      %v782 = vsel %vm418, %v744, 0
      %v785 = vsel %vm418, %v745, 0
      %v788 = vsel %vm418, %v746, 0
      %v791 = vsel %vm418, %v747, 0
      %v794 = vsel %vm418, %v748, 0
      %796 = vmatprep.subr.bf16.mxu0 0
      %797 = vmatpush1.bf16.msra.mxu0 %v768
      %798 = vmatprep.subr.bf16.mxu0 0
      %799 = vmatpush1.bf16.msra.mxu0 %v769
      %800 = vmatprep.subr.bf16.mxu0 0
      %801 = vmatpush1.bf16.msra.mxu0 0
      %802 = vmatprep.subr.bf16.mxu0 0
      %803 = vmatpush1.bf16.msra.mxu0 0
      %804 = vmatprep.subr.bf16.mxu0 0
      %805 = vmatpush1.bf16.msra.mxu0 0
      %806 = vmatprep.subr.bf16.mxu0 0
      %807 = vmatpush1.bf16.msra.mxu0 0
      %808 = vmatprep.subr.bf16.mxu0 0
      %809 = vmatpush1.bf16.msra.mxu0 0
      %810 = vmatprep.subr.bf16.mxu0 0
      %811 = vmatpush1.bf16.msra.mxu0 0
      %812 = vmatprep.subr.bf16.mxu0 0
      %813 = vmatpush1.bf16.msra.mxu0 0
      %814 = vmatprep.subr.bf16.mxu0 0
      %815 = vmatpush1.bf16.msra.mxu0 0
      %816 = vmatprep.subr.bf16.mxu0 0
      %817 = vmatpush1.bf16.msra.mxu0 0
      %818 = vmatprep.subr.bf16.mxu0 0
      %819 = vmatpush1.bf16.msra.mxu0 0
      %820 = vmatprep.subr.bf16.mxu0 0
      %821 = vmatpush1.bf16.msra.mxu0 0
      %822 = vmatprep.subr.bf16.mxu0 0
      %823 = vmatpush1.bf16.msra.mxu0 0
      %824 = vmatprep.subr.bf16.mxu0 0
      %825 = vmatpush1.bf16.msra.mxu0 0
      %826 = vmatprep.subr.bf16.mxu0 0
      %827 = vmatpush1.bf16.msra.mxu0 0
      %828 = vmatprep.mubr.bf16.mxu0 0
      %829 = vmatmul.mubr.bf16.gmra.mrb[0].mxu0 %v773
      %v830 = vpop.f32.mrb[0].mxu0
      %v831 = vadd.f32 %v758, %v830
      %v832 = vpop.f32.mrb[0].mxu0
      %v833 = vpop.f32.mrb[0].mxu0
      %v834 = vadd.f32 %v758, %v833
      %v835 = vpop.f32.mrb[0].mxu0
      %836 = vmatprep.mubr.bf16.mxu0 0
      %837 = vmatmul.mubr.bf16.gmra.mrb[0].mxu0 %v776
      %v838 = vpop.f32.mrb[0].mxu0
      %v839 = vadd.f32 %v758, %v838
      %v840 = vpop.f32.mrb[0].mxu0
      %v841 = vpop.f32.mrb[0].mxu0
      %v842 = vadd.f32 %v758, %v841
      %v843 = vpop.f32.mrb[0].mxu0
      %844 = vmatprep.mubr.bf16.mxu0 0
      %845 = vmatmul.mubr.bf16.gmra.mrb[0].mxu0 %v779
      %v846 = vpop.f32.mrb[0].mxu0
      %v847 = vadd.f32 %v758, %v846
      %v848 = vpop.f32.mrb[0].mxu0
      %v849 = vpop.f32.mrb[0].mxu0
      %v850 = vadd.f32 %v758, %v849
      %v851 = vpop.f32.mrb[0].mxu0
      %852 = vmatprep.mubr.bf16.mxu0 0
      %853 = vmatmul.mubr.bf16.gmra.mrb[0].mxu0 %v782
      %v854 = vpop.f32.mrb[0].mxu0
      %v855 = vadd.f32 %v758, %v854
      %v856 = vpop.f32.mrb[0].mxu0
      %v857 = vpop.f32.mrb[0].mxu0
      %v858 = vadd.f32 %v758, %v857
      %v859 = vpop.f32.mrb[0].mxu0
      %860 = vmatprep.mubr.bf16.mxu0 0
      %861 = vmatmul.mubr.bf16.gmra.mrb[0].mxu0 %v785
      %v862 = vpop.f32.mrb[0].mxu0
      %v863 = vadd.f32 %v758, %v862
      %v864 = vpop.f32.mrb[0].mxu0
      %v865 = vpop.f32.mrb[0].mxu0
      %v866 = vadd.f32 %v758, %v865
      %v867 = vpop.f32.mrb[0].mxu0
      %868 = vmatprep.mubr.bf16.mxu0 0
      %869 = vmatmul.mubr.bf16.gmra.mrb[0].mxu0 %v788
      %v870 = vpop.f32.mrb[0].mxu0
      %v871 = vadd.f32 %v758, %v870
      %v872 = vpop.f32.mrb[0].mxu0
      %v873 = vpop.f32.mrb[0].mxu0
      %v874 = vadd.f32 %v758, %v873
      %v875 = vpop.f32.mrb[0].mxu0
      %876 = vmatprep.mubr.bf16.mxu0 0
      %877 = vmatmul.mubr.bf16.gmra.mrb[0].mxu0 %v791
      %v878 = vpop.f32.mrb[0].mxu0
      %v879 = vadd.f32 %v758, %v878
      %v880 = vpop.f32.mrb[0].mxu0
      %v881 = vpop.f32.mrb[0].mxu0
      %v882 = vadd.f32 %v758, %v881
      %v883 = vpop.f32.mrb[0].mxu0
      %884 = vmatprep.mubr.bf16.mxu0 0
      %885 = vmatmul.mubr.bf16.gmra.mrb[0].mxu0 %v794
      %v886 = vpop.f32.mrb[0].mxu0
      %v887 = vadd.f32 %v758, %v886
      %v888 = vpop.f32.mrb[0].mxu0
      %v889 = vpop.f32.mrb[0].mxu0
      %v890 = vadd.f32 %v758, %v889
      %v891 = vpop.f32.mrb[0].mxu0
      %892 = vdwg.mxu0
      %v893 = vmax.f32 %v831, 0.0
      %v894 = vmax.f32 %v834, 0.0
      %v895 = vmax.f32 %v839, 0.0
      %v896 = vmax.f32 %v842, 0.0
      %v897 = vmax.f32 %v847, 0.0
      %v898 = vmax.f32 %v850, 0.0
      %v899 = vmax.f32 %v855, 0.0
      %v900 = vmax.f32 %v858, 0.0
      %v901 = vmax.f32 %v863, 0.0
      %v902 = vmax.f32 %v866, 0.0
      %v903 = vmax.f32 %v871, 0.0
      %v904 = vmax.f32 %v874, 0.0
      %v905 = vmax.f32 %v879, 0.0
      %v906 = vmax.f32 %v882, 0.0
      %v907 = vmax.f32 %v887, 0.0
      %v908 = vmax.f32 %v890, 0.0
      %v909 = vld [vmem:[%s7] sm:$0x1]
      %v910 = vld [vmem:[#allocation2] sm:$0x1]
      %v912 = vlaneseq
      %v913 = vshrl.u32 %v912, 7
      %v914 = vsub.s32 0, %v913
      %v915 = vrot.slane %v909, %v914
      %v917 = vmul.f32 %v893, %v915
      %v918 = vmul.f32 %v894, %v915
      %v919 = vmul.f32 %v895, %v915
      %v920 = vmul.f32 %v896, %v915
      %v921 = vmul.f32 %v897, %v915
      %v922 = vmul.f32 %v898, %v915
      %v923 = vmul.f32 %v899, %v915
      %v924 = vmul.f32 %v900, %v915
      %v925 = vmul.f32 %v901, %v915
      %v926 = vmul.f32 %v902, %v915
      %v927 = vmul.f32 %v903, %v915
      %v928 = vmul.f32 %v904, %v915
      %v929 = vmul.f32 %v905, %v915
      %v930 = vmul.f32 %v906, %v915
      %v931 = vmul.f32 %v907, %v915
      %v932 = vmul.f32 %v908, %v915
      %vm933 = vcmask 130048
      %v934 = vsel %vm933, %v917, 0.0
      %935 = vadd.xlane.f32.xlu0 %v934
      %v936 = vpop.xlane.xlu0 %935
      %v937 = vsel %vm933, %v918, 0.0
      %938 = vadd.xlane.f32.xlu0 %v937
      %v939 = vpop.xlane.xlu0 %938
      %v940 = vsel %vm933, %v919, 0.0
      %941 = vadd.xlane.f32.xlu0 %v940
      %v942 = vpop.xlane.xlu0 %941
      %v943 = vsel %vm933, %v920, 0.0
      %944 = vadd.xlane.f32.xlu0 %v943
      %v945 = vpop.xlane.xlu0 %944
      %v946 = vsel %vm933, %v921, 0.0
      %947 = vadd.xlane.f32.xlu0 %v946
      %v948 = vpop.xlane.xlu0 %947
      %v949 = vsel %vm933, %v922, 0.0
      %950 = vadd.xlane.f32.xlu0 %v949
      %v951 = vpop.xlane.xlu0 %950
      %v952 = vsel %vm933, %v923, 0.0
      %953 = vadd.xlane.f32.xlu0 %v952
      %v954 = vpop.xlane.xlu0 %953
      %v955 = vsel %vm933, %v924, 0.0
      %956 = vadd.xlane.f32.xlu0 %v955
      %v957 = vpop.xlane.xlu0 %956
      %v958 = vsel %vm933, %v925, 0.0
      %959 = vadd.xlane.f32.xlu0 %v958
      %v960 = vpop.xlane.xlu0 %959
      %v961 = vsel %vm933, %v926, 0.0
      %962 = vadd.xlane.f32.xlu0 %v961
      %v963 = vpop.xlane.xlu0 %962
      %v964 = vsel %vm933, %v927, 0.0
      %965 = vadd.xlane.f32.xlu0 %v964
      %v966 = vpop.xlane.xlu0 %965
      %v967 = vsel %vm933, %v928, 0.0
      %968 = vadd.xlane.f32.xlu0 %v967
      %v969 = vpop.xlane.xlu0 %968
      %v970 = vsel %vm933, %v929, 0.0
      %971 = vadd.xlane.f32.xlu0 %v970
      %v972 = vpop.xlane.xlu0 %971
      %v973 = vsel %vm933, %v930, 0.0
      %974 = vadd.xlane.f32.xlu0 %v973
      %v975 = vpop.xlane.xlu0 %974
      %v976 = vsel %vm933, %v931, 0.0
      %977 = vadd.xlane.f32.xlu0 %v976
      %v978 = vpop.xlane.xlu0 %977
      %v979 = vsel %vm933, %v932, 0.0
      %980 = vadd.xlane.f32.xlu0 %v979
      %v981 = vpop.xlane.xlu0 %980
      %v983 = vlaneseq
      %v984 = vshrl.u32 %v983, 7
      %v985 = vsub.s32 0, %v984
      %v986 = vrot.slane %v910, %v985
      %v988 = vadd.f32 %v936, %v986
      %v989 = vadd.f32 %v939, %v986
      %v990 = vadd.f32 %v942, %v986
      %v991 = vadd.f32 %v945, %v986
      %v992 = vadd.f32 %v948, %v986
      %v993 = vadd.f32 %v951, %v986
      %v994 = vadd.f32 %v954, %v986
      %v995 = vadd.f32 %v957, %v986
      %v996 = vadd.f32 %v960, %v986
      %v997 = vadd.f32 %v963, %v986
      %v998 = vadd.f32 %v966, %v986
      %v999 = vadd.f32 %v969, %v986
      %v1000 = vadd.f32 %v972, %v986
      %v1001 = vadd.f32 %v975, %v986
      %v1002 = vadd.f32 %v978, %v986
      %v1003 = vadd.f32 %v981, %v986
      %vm1004 = vcmask 7168
      %1005 = vst.msk [vmem:[%s336] sm:$0xff] %vm1004, %v988
      %1006 = vst.msk [vmem:[%s336 + $0x8] sm:$0xff] %vm1004, %v989
      %1007 = vst.msk [vmem:[%s336 + $0x10] sm:$0xff] %vm1004, %v990
      %1008 = vst.msk [vmem:[%s336 + $0x18] sm:$0xff] %vm1004, %v991
      %1009 = vst.msk [vmem:[%s336 + $0x20] sm:$0xff] %vm1004, %v992
      %1010 = vst.msk [vmem:[%s336 + $0x28] sm:$0xff] %vm1004, %v993
      %1011 = vst.msk [vmem:[%s336 + $0x30] sm:$0xff] %vm1004, %v994
      %1012 = vst.msk [vmem:[%s336 + $0x38] sm:$0xff] %vm1004, %v995
      %1013 = vst.msk [vmem:[%s336 + $0x40] sm:$0xff] %vm1004, %v996
      %1014 = vst.msk [vmem:[%s336 + $0x48] sm:$0xff] %vm1004, %v997
      %1015 = vst.msk [vmem:[%s336 + $0x50] sm:$0xff] %vm1004, %v998
      %1016 = vst.msk [vmem:[%s336 + $0x58] sm:$0xff] %vm1004, %v999
      %1017 = vst.msk [vmem:[%s336 + $0x60] sm:$0xff] %vm1004, %v1000
      %1018 = vst.msk [vmem:[%s336 + $0x68] sm:$0xff] %vm1004, %v1001
      %1019 = vst.msk [vmem:[%s336 + $0x70] sm:$0xff] %vm1004, %v1002
      %1020 = vst.msk [vmem:[%s336 + $0x78] sm:$0xff] %vm1004, %v1003
      %s1021 = smul.u32 16, %s22
      %p1022 = scmp.lt.s32.totalorder %s1021, 31
      %s1023 = scalar_select %p1022, %s1021, 31
      %s1024 = smul.addr %s1023, 8
      %s1025 = scalar_lea.vmem %s9, %s1024
      // Predicated region
      $region57: #{tpu_custom_call.1} parent=55 // pred_check
        %p1026 = pneg %p234
      $region58: #{tpu_custom_call.1} parent=55 // pred_check_branch
        %1028 = sbr.rel (%p1026) target = $region60
      $region59: #{tpu_custom_call.1} parent=55 // pred_region
        %s1029 = smul.u32 16, %s22
      $region60: #{tpu_custom_call.1} parent=55 // pred_fallthru
        _
    $region56: #{tpu_custom_call.1} parent=5 // pred_fallthru
      _
    %p1030 = scmp.le.s32.totalorder 2, %s17
    // Predicated region
    $region61: #{tpu_custom_call.1} parent=5 // pred_check
      %p1031 = pneg %p1030
    $region62: #{tpu_custom_call.1} parent=5 // pred_check_branch
      %1033 = sbr.rel (%p1031) target = $region64
    $region63: #{tpu_custom_call.1} parent=5 // pred_region
      %s1034 = ssub.s32 %s17, 2
      // Predicated region
      $region65: #{tpu_custom_call.1} parent=63 // pred_check
        %p1035 = pneg %p240
      $region66: #{tpu_custom_call.1} parent=63 // pred_check_branch
        %1037 = sbr.rel (%p1035) target = $region68
      $region67: #{tpu_custom_call.1} parent=63 // pred_region
        %s1038 = smul.u32 16, %s23
        %p1039 = scmp.lt.s32.totalorder %s1038, 31
        %s1040 = scalar_select %p1039, %s1038, 31
        %s1041 = smul.addr %s1040, 8
        %s1042 = scalar_lea.vmem %s9, %s1041
      $region68: #{tpu_custom_call.1} parent=63 // pred_fallthru
        _
    $region64: #{tpu_custom_call.1} parent=5 // pred_fallthru
      _
  $region6: #{tpu_custom_call.1} parent=0 // loop_footer
    %s21 = sadd.s32 1, %s17
  $region7: #{tpu_custom_call.1} parent=0 // loop_footer_branch
    %16 = sbr.rel target = $region3
  $region8: #{tpu_custom_call.1} parent=0 // loop_exit
    _

</llo_original>
